<compile_context>
chip_gen: v7x
topology: tpu7x:2x2x1
jax: 0.10.0
libtpu: 0.0.40
codegen_flags: <defaults>
</compile_context>

<pallas_src>
import functools

import jax
import jax.numpy as jnp
from jax.experimental import pallas as pl
from jax.experimental.pallas import tpu as pltpu


def _transition_kernel(x_ref, scale_ref, shift_ref, w_ref, o_ref, hsum_ref):
    """Processes one (batch, output-row-group) tile, NHWC layout.

    x_ref:     (1, 2*TH, W, Cin)     f32  input rows of the pooling windows
    scale_ref: (1, 1, Cin)           f32  folded BN scale  (gamma / sqrt(var+eps))
    shift_ref: (1, 1, Cin)           f32  folded BN shift  (beta - mean*scale)
    w_ref:     (Cin, Cout)           bf16 1x1-conv weight as a channel matmul
    o_ref:     (1, TH*(W//2), Cout)  f32  flattened (h', w') output rows
    hsum_ref:  (TH*W, Cin)           f32  scratch: height-pooled activation
    """
    _, th2, W, Cin = x_ref.shape
    TH = th2 // 2
    M = TH * (W // 2)

    # BatchNorm (eval) + ReLU in f32 on the VPU; scale/shift broadcast on lanes.
    a = jnp.maximum(x_ref[0] * scale_ref[...] + shift_ref[...], 0.0)  # (2TH, W, Cin)

    # 2x2 average pool BEFORE the (linear, bias-free) 1x1 conv.
    # Height: pair-sum adjacent rows via a leading-dim split + select.
    a4 = a.reshape(TH, 2, W, Cin)
    hsum_ref[...] = (a4[:, 0] + a4[:, 1]).reshape(TH * W, Cin)        # (TH*W, Cin)
    # Width: pair-sum adjacent columns with stride-2 sublane reads (W is even,
    # so global even/odd flat rows are exactly the width pairs, in order).
    pooled = 0.25 * (hsum_ref[pl.ds(0, M, stride=2), :] +
                     hsum_ref[pl.ds(1, M, stride=2), :])              # (M, Cin)

    # Single fused channel matmul on the MXU: bf16 inputs, f32 accumulation.
    y = jnp.dot(pooled.astype(jnp.bfloat16), w_ref[...],
                preferred_element_type=jnp.float32)                   # (M, Cout)
    o_ref[0] = y.astype(o_ref.dtype)


def _pick_row_group(H, W, Cin, Cout, elem_bytes=4,
                    budget_bytes=20 * 1024 * 1024):
    """Largest output-row group TH (dividing H//2) whose working set fits VMEM.

    Budget is conservative so the same choice is safe on v7x (64 MiB physical
    VMEM).  Legal TH: divides H//2, and the output block's second-minor dim
    TH*(W//2) is 8-aligned unless the block spans the full axis.
    """
    half_h, half_w = H // 2, W // 2
    legal = [th for th in range(1, half_h + 1)
             if half_h % th == 0 and (th == half_h or (th * half_w) % 8 == 0)]

    def footprint(th):
        x_tile = 2 * th * W * Cin * elem_bytes          # one input buffer
        scr = th * W * Cin * elem_bytes                 # hsum scratch
        out_tile = th * half_w * Cout * elem_bytes      # one output buffer
        # double-buffered input & output + scratch + bf16 weight
        return 2 * x_tile + scr + 2 * out_tile + Cin * Cout * 2

    fitting = [th for th in legal if footprint(th) <= budget_bytes]
    return max(fitting) if fitting else min(legal)


@functools.partial(jax.jit, static_argnames=("eps",))
def transition_forward_nhwc(x_nhwc, gamma, beta, run_mean, run_var, conv_w,
                            eps=1e-5):
    """NHWC production path (no activation transpose).

    x_nhwc: (N, H, W, Cin) -> (N, H//2, W//2, Cout), float32.
    """
    N, H, W, Cin = x_nhwc.shape
    Cout = conv_w.shape[0]
    assert H % 2 == 0 and W % 2 == 0

    # Fold eval-mode BN into per-channel scale/shift; weight as channel matmul.
    inv = 1.0 / jnp.sqrt(run_var.astype(jnp.float32) + eps)
    scale = (gamma * inv).reshape(1, 1, Cin).astype(jnp.float32)
    shift = (beta - run_mean * gamma * inv).reshape(1, 1, Cin).astype(jnp.float32)
    wmat = conv_w[:, :, 0, 0].T.astype(jnp.bfloat16)                  # (Cin, Cout)

    TH = _pick_row_group(H, W, Cin, Cout)
    grid = (N, (H // 2) // TH)        # note: shrink TH if N is tiny on v7x (2 TCs)
    M = TH * (W // 2)

    out_flat = pl.pallas_call(
        _transition_kernel,
        out_shape=jax.ShapeDtypeStruct((N, (H // 2) * (W // 2), Cout),
                                       jnp.float32),
        grid_spec=pltpu.PrefetchScalarGridSpec(
            num_scalar_prefetch=0,
            grid=grid,
            in_specs=[
                # If DMA is still exposed at large tiles, add
                # pipeline_mode=pl.Buffered(3) on this spec.
                pl.BlockSpec((1, 2 * TH, W, Cin), lambda n, g: (n, g, 0, 0)),
                pl.BlockSpec((1, 1, Cin), lambda n, g: (0, 0, 0)),
                pl.BlockSpec((1, 1, Cin), lambda n, g: (0, 0, 0)),
                pl.BlockSpec((Cin, Cout), lambda n, g: (0, 0)),
            ],
            out_specs=pl.BlockSpec((1, M, Cout), lambda n, g: (n, g, 0)),
            scratch_shapes=[pltpu.VMEM((TH * W, Cin), jnp.float32)],
        ),
        compiler_params=pltpu.CompilerParams(
            dimension_semantics=("parallel", "parallel"),
            vmem_limit_bytes=32 * 1024 * 1024),
    )(x_nhwc.astype(jnp.float32), scale, shift, wmat)

    # Contiguous reshape (free): (N, H'*W', Cout) -> (N, H', W', Cout).
    return out_flat.reshape(N, H // 2, W // 2, Cout)


def transition_forward(x_nchw, gamma, beta, run_mean, run_var, conv_w, eps=1e-5):
    """Drop-in NCHW interface matching the PyTorch module.

    Pays one NCHW<->NHWC transpose at each boundary; prefer
    `transition_forward_nhwc` when the surrounding model keeps NHWC.
    """
    x_nhwc = jnp.transpose(x_nchw, (0, 2, 3, 1))
    out_nhwc = transition_forward_nhwc(x_nhwc, gamma, beta, run_mean, run_var,
                                       conv_w, eps=eps)
    return jnp.transpose(out_nhwc, (0, 3, 1, 2))


def _reference(x_nchw, gamma, beta, run_mean, run_var, conv_w, eps=1e-5):
    """Pure-JAX f32 reference matching PyTorch eval-mode semantics (NCHW)."""
    inv = 1.0 / jnp.sqrt(run_var + eps)
    xn = (x_nchw - run_mean[None, :, None, None]) * inv[None, :, None, None]
    xn = xn * gamma[None, :, None, None] + beta[None, :, None, None]
    a = jnp.maximum(xn, 0.0)
    y = jnp.einsum("nchw,oc->nohw", a, conv_w[:, :, 0, 0])
    N, Co, H, W = y.shape
    return y.reshape(N, Co, H // 2, 2, W // 2, 2).mean(axis=(3, 5))


if __name__ == "__main__":
    N, Cin, Cout, H, W = 2, 8, 4, 16, 16

    key = jax.random.PRNGKey(0)
    kx, kg, kb, km, kv, kw = jax.random.split(key, 6)

    x_nchw = jax.random.normal(kx, (N, Cin, H, W), dtype=jnp.float32)
    gamma = jax.random.uniform(kg, (Cin,), jnp.float32, 0.5, 1.5)
    beta = jax.random.normal(kb, (Cin,), jnp.float32) * 0.1
    run_mean = jax.random.normal(km, (Cin,), jnp.float32) * 0.1
    run_var = jax.random.uniform(kv, (Cin,), jnp.float32, 0.5, 1.5)
    conv_w = jax.random.normal(kw, (Cout, Cin, 1, 1), jnp.float32) * (1.0 / Cin) ** 0.5

    # Production NHWC path (no transpose around the kernel).
    x_nhwc = jnp.transpose(x_nchw, (0, 2, 3, 1))
    out_nhwc = jax.block_until_ready(
        transition_forward_nhwc(x_nhwc, gamma, beta, run_mean, run_var, conv_w))

    # NCHW drop-in wrapper (PyTorch-layout parity).
    out_nchw = jax.block_until_ready(
        transition_forward(x_nchw, gamma, beta, run_mean, run_var, conv_w))

    ref_nchw = _reference(x_nchw, gamma, beta, run_mean, run_var, conv_w)
    ref_nhwc = jnp.transpose(ref_nchw, (0, 2, 3, 1))

    assert out_nhwc.shape == (N, H // 2, W // 2, Cout)
    assert out_nchw.shape == (N, Cout, H // 2, W // 2)

    # bf16 MXU inputs (f32 accumulation) vs the f32 reference -> loosened tolerance.
    err_nhwc = float(jnp.max(jnp.abs(out_nhwc - ref_nhwc)))
    err_nchw = float(jnp.max(jnp.abs(out_nchw - ref_nchw)))
    assert jnp.allclose(out_nhwc, ref_nhwc, rtol=2e-2, atol=2e-2), err_nhwc
    assert jnp.allclose(out_nchw, ref_nchw, rtol=2e-2, atol=2e-2), err_nchw

    print("KERNEL_OK")
</pallas_src>

<mosaic_0001>
module attributes {stable_mosaic.version = 11 : i64} {
  func.func @_transition_kernel(%arg0: i32, %arg1: i32, %arg2: memref<1x16x16x8xf32, #tpu.memory_space<vmem>>, %arg3: memref<1x1x8xf32, #tpu.memory_space<vmem>>, %arg4: memref<1x1x8xf32, #tpu.memory_space<vmem>>, %arg5: memref<8x4xbf16, #tpu.memory_space<vmem>>, %arg6: memref<1x64x4xf32, #tpu.memory_space<vmem>>, %arg7: memref<128x8xf32, #tpu.memory_space<vmem>>) attributes {dimension_semantics = [#tpu.dimension_semantics<parallel>, #tpu.dimension_semantics<parallel>], iteration_bounds = array<i64: 2, 1>, scalar_prefetch = 0 : i64, scratch_operands = 1 : i64, tpu.core_type = #tpu.core_type<tc>, window_params = [{transform_indices = @transform_0, window_bounds = array<i64: 1, 16, 16, 8>}, {pipeline_mode = #tpu.pipeline_mode<synchronous>, transform_indices = @transform_1, window_bounds = array<i64: 1, 1, 8>}, {pipeline_mode = #tpu.pipeline_mode<synchronous>, transform_indices = @transform_2, window_bounds = array<i64: 1, 1, 8>}, {pipeline_mode = #tpu.pipeline_mode<synchronous>, transform_indices = @transform_3, window_bounds = array<i64: 8, 4>}, {transform_indices = @transform_4, window_bounds = array<i64: 1, 64, 4>}]} {
    %c0 = arith.constant 0 : index
    %c0_0 = arith.constant 0 : index
    %c0_1 = arith.constant 0 : index
    %c0_2 = arith.constant 0 : index
    %0 = vector.load %arg2[%c0, %c0_0, %c0_1, %c0_2] : memref<1x16x16x8xf32, #tpu.memory_space<vmem>>, vector<1x16x16x8xf32>
    %1 = vector.shape_cast %0 : vector<1x16x16x8xf32> to vector<16x16x8xf32>
    %c0_3 = arith.constant 0 : index
    %c0_4 = arith.constant 0 : index
    %c0_5 = arith.constant 0 : index
    %2 = vector.load %arg3[%c0_3, %c0_4, %c0_5] : memref<1x1x8xf32, #tpu.memory_space<vmem>>, vector<1x1x8xf32>
    %3 = vector.broadcast %2 : vector<1x1x8xf32> to vector<16x16x8xf32>
    %4 = arith.mulf %1, %3 : vector<16x16x8xf32>
    %c0_6 = arith.constant 0 : index
    %c0_7 = arith.constant 0 : index
    %c0_8 = arith.constant 0 : index
    %5 = vector.load %arg4[%c0_6, %c0_7, %c0_8] : memref<1x1x8xf32, #tpu.memory_space<vmem>>, vector<1x1x8xf32>
    %6 = vector.broadcast %5 : vector<1x1x8xf32> to vector<16x16x8xf32>
    %7 = arith.addf %4, %6 : vector<16x16x8xf32>
    %cst = arith.constant 0.000000e+00 : f32
    %8 = vector.broadcast %cst : f32 to vector<16x16x8xf32>
    %9 = arith.maximumf %7, %8 : vector<16x16x8xf32>
    %10 = vector.shape_cast %9 : vector<16x16x8xf32> to vector<8x2x16x8xf32>
    %11 = vector.extract_strided_slice %10 {offsets = [0, 0, 0, 0], sizes = [8, 1, 16, 8], strides = [1, 1, 1, 1]} : vector<8x2x16x8xf32> to vector<8x1x16x8xf32>
    %12 = vector.shape_cast %11 : vector<8x1x16x8xf32> to vector<8x16x8xf32>
    %13 = vector.extract_strided_slice %10 {offsets = [0, 1, 0, 0], sizes = [8, 1, 16, 8], strides = [1, 1, 1, 1]} : vector<8x2x16x8xf32> to vector<8x1x16x8xf32>
    %14 = vector.shape_cast %13 : vector<8x1x16x8xf32> to vector<8x16x8xf32>
    %15 = arith.addf %12, %14 : vector<8x16x8xf32>
    %16 = vector.shape_cast %15 : vector<8x16x8xf32> to vector<128x8xf32>
    %c0_9 = arith.constant 0 : index
    %c0_10 = arith.constant 0 : index
    %17 = vector.load %arg7[%c0_9, %c0_10] : memref<128x8xf32, #tpu.memory_space<vmem>>, vector<128x8xf32>
    tpu.vector_store %arg7[%c0_9, %c0_10], %16 {strides = array<i32>} : memref<128x8xf32, #tpu.memory_space<vmem>>, vector<128x8xf32>,
    %c0_11 = arith.constant 0 : index
    %c0_12 = arith.constant 0 : index
    %18 = tpu.strided_load %arg7[%c0_11, %c0_12] {strides = array<i32: 2, 1>} : memref<128x8xf32, #tpu.memory_space<vmem>>, vector<64x8xf32>
    %c1 = arith.constant 1 : index
    %c0_13 = arith.constant 0 : index
    %19 = tpu.strided_load %arg7[%c1, %c0_13] {strides = array<i32: 2, 1>} : memref<128x8xf32, #tpu.memory_space<vmem>>, vector<64x8xf32>
    %20 = arith.addf %18, %19 : vector<64x8xf32>
    %cst_14 = arith.constant 2.500000e-01 : f32
    %21 = vector.broadcast %cst_14 : f32 to vector<64x8xf32>
    %22 = arith.mulf %21, %20 : vector<64x8xf32>
    %23 = arith.truncf %22 : vector<64x8xf32> to vector<64x8xbf16>
    %c0_15 = arith.constant 0 : index
    %c0_16 = arith.constant 0 : index
    %24 = vector.load %arg5[%c0_15, %c0_16] : memref<8x4xbf16, #tpu.memory_space<vmem>>, vector<8x4xbf16>
    %cst_17 = arith.constant dense<0.000000e+00> : vector<64x4xf32>
    %25 = tpu.matmul %23, %24, %cst_17 {dimension_numbers = #tpu.dot_dimension_numbers<[1], [0], [0], [1], [0, 0, 1, 1], [], []>} : vector<64x8xbf16>, vector<8x4xbf16>, vector<64x4xf32> -> vector<64x4xf32>
    %c0_18 = arith.constant 0 : index
    %c0_19 = arith.constant 0 : index
    %c0_20 = arith.constant 0 : index
    %26 = vector.load %arg6[%c0_18, %c0_19, %c0_20] : memref<1x64x4xf32, #tpu.memory_space<vmem>>, vector<1x64x4xf32>
    %27 = vector.shape_cast %26 : vector<1x64x4xf32> to vector<64x4xf32>
    %28 = vector.shape_cast %25 : vector<64x4xf32> to vector<1x64x4xf32>
    tpu.vector_store %arg6[%c0_18, %c0_19, %c0_20], %28 {strides = array<i32>} : memref<1x64x4xf32, #tpu.memory_space<vmem>>, vector<1x64x4xf32>,
    return
  }
  func.func @transform_0(%arg0: i32, %arg1: i32) -> (i32, i32, i32, i32) {
    %c0_i32 = arith.constant 0 : i32
    %c0_i32_0 = arith.constant 0 : i32
    %c0_i32_1 = arith.constant 0 : i32
    return %arg0, %arg1, %c0_i32, %c0_i32_0 : i32, i32, i32, i32
  }
  func.func @transform_1(%arg0: i32, %arg1: i32) -> (i32, i32, i32) {
    %c0_i32 = arith.constant 0 : i32
    %c0_i32_0 = arith.constant 0 : i32
    %c0_i32_1 = arith.constant 0 : i32
    %c0_i32_2 = arith.constant 0 : i32
    return %c0_i32, %c0_i32_0, %c0_i32_1 : i32, i32, i32
  }
  func.func @transform_2(%arg0: i32, %arg1: i32) -> (i32, i32, i32) {
    %c0_i32 = arith.constant 0 : i32
    %c0_i32_0 = arith.constant 0 : i32
    %c0_i32_1 = arith.constant 0 : i32
    %c0_i32_2 = arith.constant 0 : i32
    return %c0_i32, %c0_i32_0, %c0_i32_1 : i32, i32, i32
  }
  func.func @transform_3(%arg0: i32, %arg1: i32) -> (i32, i32) {
    %c0_i32 = arith.constant 0 : i32
    %c0_i32_0 = arith.constant 0 : i32
    %c0_i32_1 = arith.constant 0 : i32
    return %c0_i32, %c0_i32_0 : i32, i32
  }
  func.func @transform_4(%arg0: i32, %arg1: i32) -> (i32, i32, i32) {
    %c0_i32 = arith.constant 0 : i32
    %c0_i32_0 = arith.constant 0 : i32
    return %arg0, %arg1, %c0_i32 : i32, i32, i32
  }
}

</mosaic_0001>

<llo_original>
// kernel: transition_forward_nhwc.1
$region0: #{transition_forward_nhwc.1}
  #allocation0 [shape = 'u32[]', space=smem, size = 0x4, offset = 0x4, fixed_abs, tag = 'smem constant byte address 0x4 - core index']
  #allocation1 [shape = 'u32[144,128]{1,0:T(1,128)}', space=vmem, size = 0x12000, scoped, tag = 'internal scratch']
  #allocation2 [shape = 'f32[128,8]{1,0:T(8,128)}', space=vmem, size = 0x10000, scoped, tag = 'scratch operand']
  %s0 = inlined_call_operand.vmem [shape: f32[2,16,16,8], index: 0, kind: input, shape index: {}]
  %s1 = inlined_call_operand.vmem [shape: f32[1,1,8], index: 1, kind: input, shape index: {}]
  %s2 = inlined_call_operand.vmem [shape: f32[1,1,8], index: 2, kind: input, shape index: {}]
  %s3 = inlined_call_operand.vmem [shape: bf16[8,4], index: 3, kind: input, shape index: {}]
  %s4 = inlined_call_operand.vmem [shape: f32[2,64,4], index: 4, kind: output, shape index: {}]
  %s5 = sld [smem:[#allocation0]]
  $region49: #{transition_forward_nhwc.1} parent=0
    _
  %s7 = ssub.s32 1, %s5
  %s8 = scalar_select 0, %s7, %s5
  loop: start=0, step=1, limit=4
  $region2: #{transition_forward_nhwc.1} parent=0 // loop_pre_header
    _
  $region3: #{transition_forward_nhwc.1} parent=0 // loop_header
    %s10 = sphi 0, %s14
    %p11 = scmp.ge.s32.totalorder %s10, 4
    %s17 = sphi 0, %s29
    %s18 = sphi 0, %s25
    %s19 = sphi 0, %s17
    %s20 = sphi 0, %s18
    %s21 = sphi 0, %s19
    %s22 = sphi 0, %s20
    %s34 = sphi 0, %s36
    %s37 = sphi 0, %s34
    %s38 = sphi 0, %s37
    %s54 = sphi 0, %s38
    %s58 = sphi 0, %s58
    %s60 = sphi 0, %s58
    %s61 = sphi 0, %s60
    %s75 = sphi 0, %s61
    %s79 = sphi 0, %s79
    %s81 = sphi 0, %s79
    %s82 = sphi 0, %s81
    %s96 = sphi 0, %s82
    %s100 = sphi 0, %s100
    %s102 = sphi 0, %s100
    %s103 = sphi 0, %s102
    %s117 = sphi 0, %s103
    %s125 = sphi 0, %s127
    %s128 = sphi 0, %s125
    %s129 = sphi 0, %s128
    %s145 = sphi 0, %s129
  $region4: #{transition_forward_nhwc.1} parent=0 // loop_header_branch
    %13 = sbr.rel (%p11) target = $region8
  $region5: #{transition_forward_nhwc.1} parent=0 // loop_body
    %s15 = ssub.s32 %s10, 1
    %s16 = ssub.s32 %s10, 2
    %s23 = sadd.s32 1, %s18
    %p24 = scmp.ge.s32.totalorder %s23, 1
    %s25 = scalar_select %p24, 0, %s23
    %s26 = sadd.s32 1, %s17
    %s27 = scalar_select %p24, %s26, %s17
    %p28 = scmp.ge.s32.totalorder %s27, 2
    %s29 = scalar_select %p28, 0, %s27
    %s30 = ssub.s32 %s17, %s29
    %s31 = ssub.s32 %s18, %s25
    %s32 = sor.u32 %s30, %s31
    %p33 = scmp.eq.s32.totalorder %s32, 0
    %s35 = sadd.s32 %s34, 1
    %s36 = scalar_select %p33, %s34, %s35
    %p39 = pneg %p33
    %p40 = scmp.eq.s32.totalorder %s10, 1
    %p41 = por %p39, %p40
    %p42 = scmp.ne.s32.totalorder %s34, %s37
    %p43 = scmp.eq.s32.totalorder %s10, 0
    %p44 = por %p42, %p43
    %p45 = scmp.ne.s32.totalorder %s34, %s37
    %p46 = scmp.eq.s32.totalorder %s15, 1
    %p47 = por %p45, %p46
    %p48 = scmp.ne.s32.totalorder %s37, %s38
    %p49 = scmp.eq.s32.totalorder %s15, 0
    %p50 = por %p48, %p49
    %p51 = scmp.ne.s32.totalorder %s37, %s38
    %p52 = scmp.eq.s32.totalorder %s16, 1
    %p53 = por %p51, %p52
    %p55 = scmp.ne.s32.totalorder %s38, %s54
    %p56 = scmp.eq.s32.totalorder %s16, 0
    %p57 = por %p55, %p56
    %s59 = sadd.s32 %s58, 1
    %p62 = scmp.eq.s32.totalorder %s10, 1
    %p63 = scmp.ne.s32.totalorder %s58, %s60
    %p64 = scmp.eq.s32.totalorder %s10, 0
    %p65 = por %p63, %p64
    %p66 = scmp.ne.s32.totalorder %s58, %s60
    %p67 = scmp.eq.s32.totalorder %s15, 1
    %p68 = por %p66, %p67
    %p69 = scmp.ne.s32.totalorder %s60, %s61
    %p70 = scmp.eq.s32.totalorder %s15, 0
    %p71 = por %p69, %p70
    %p72 = scmp.ne.s32.totalorder %s60, %s61
    %p73 = scmp.eq.s32.totalorder %s16, 1
    %p74 = por %p72, %p73
    %p76 = scmp.ne.s32.totalorder %s61, %s75
    %p77 = scmp.eq.s32.totalorder %s16, 0
    %p78 = por %p76, %p77
    %s80 = sadd.s32 %s79, 1
    %p83 = scmp.eq.s32.totalorder %s10, 1
    %p84 = scmp.ne.s32.totalorder %s79, %s81
    %p85 = scmp.eq.s32.totalorder %s10, 0
    %p86 = por %p84, %p85
    %p87 = scmp.ne.s32.totalorder %s79, %s81
    %p88 = scmp.eq.s32.totalorder %s15, 1
    %p89 = por %p87, %p88
    %p90 = scmp.ne.s32.totalorder %s81, %s82
    %p91 = scmp.eq.s32.totalorder %s15, 0
    %p92 = por %p90, %p91
    %p93 = scmp.ne.s32.totalorder %s81, %s82
    %p94 = scmp.eq.s32.totalorder %s16, 1
    %p95 = por %p93, %p94
    %p97 = scmp.ne.s32.totalorder %s82, %s96
    %p98 = scmp.eq.s32.totalorder %s16, 0
    %p99 = por %p97, %p98
    %s101 = sadd.s32 %s100, 1
    %p104 = scmp.eq.s32.totalorder %s10, 1
    %p105 = scmp.ne.s32.totalorder %s100, %s102
    %p106 = scmp.eq.s32.totalorder %s10, 0
    %p107 = por %p105, %p106
    %p108 = scmp.ne.s32.totalorder %s100, %s102
    %p109 = scmp.eq.s32.totalorder %s15, 1
    %p110 = por %p108, %p109
    %p111 = scmp.ne.s32.totalorder %s102, %s103
    %p112 = scmp.eq.s32.totalorder %s15, 0
    %p113 = por %p111, %p112
    %p114 = scmp.ne.s32.totalorder %s102, %s103
    %p115 = scmp.eq.s32.totalorder %s16, 1
    %p116 = por %p114, %p115
    %p118 = scmp.ne.s32.totalorder %s103, %s117
    %p119 = scmp.eq.s32.totalorder %s16, 0
    %p120 = por %p118, %p119
    %s121 = ssub.s32 %s17, %s29
    %s122 = ssub.s32 %s18, %s25
    %s123 = sor.u32 %s121, %s122
    %p124 = scmp.eq.s32.totalorder %s123, 0
    %s126 = sadd.s32 %s125, 1
    %s127 = scalar_select %p124, %s125, %s126
    %p130 = pneg %p124
    %p131 = scmp.eq.s32.totalorder %s10, 1
    %p132 = por %p130, %p131
    %p133 = scmp.ne.s32.totalorder %s125, %s128
    %p134 = scmp.eq.s32.totalorder %s10, 0
    %p135 = por %p133, %p134
    %p136 = scmp.ne.s32.totalorder %s125, %s128
    %p137 = scmp.eq.s32.totalorder %s15, 1
    %p138 = por %p136, %p137
    %p139 = scmp.ne.s32.totalorder %s128, %s129
    %p140 = scmp.eq.s32.totalorder %s15, 0
    %p141 = por %p139, %p140
    %p142 = scmp.ne.s32.totalorder %s128, %s129
    %p143 = scmp.eq.s32.totalorder %s16, 1
    %p144 = por %p142, %p143
    %p146 = scmp.ne.s32.totalorder %s129, %s145
    %p147 = scmp.eq.s32.totalorder %s16, 0
    %p148 = por %p146, %p147
    %p149 = scmp.le.s32.totalorder 1, %s10
    %p150 = scmp.lt.s32.totalorder %s10, 3
    %p151 = pnand %p149, %p150
    %p152 = pneg %p151
    // Predicated region
    $region9: #{transition_forward_nhwc.1} parent=5 // pred_check
      _
    $region10: #{transition_forward_nhwc.1} parent=5 // pred_check_branch
      %154 = sbr.rel (%p151) target = $region12
    $region11: #{transition_forward_nhwc.1} parent=5 // pred_region
      %s155 = ssub.s32 %s10, 1
      // Predicated region
      $region13: #{transition_forward_nhwc.1} parent=11 // pred_check
        %p156 = pneg %p71
      $region14: #{transition_forward_nhwc.1} parent=11 // pred_check_branch
        %158 = sbr.rel (%p156) target = $region16
      $region15: #{transition_forward_nhwc.1} parent=11 // pred_region
        _
      $region16: #{transition_forward_nhwc.1} parent=11 // pred_fallthru
        _
      // Predicated region
      $region17: #{transition_forward_nhwc.1} parent=11 // pred_check
        %p159 = pneg %p92
      $region18: #{transition_forward_nhwc.1} parent=11 // pred_check_branch
        %161 = sbr.rel (%p159) target = $region20
      $region19: #{transition_forward_nhwc.1} parent=11 // pred_region
        _
      $region20: #{transition_forward_nhwc.1} parent=11 // pred_fallthru
        _
      // Predicated region
      $region21: #{transition_forward_nhwc.1} parent=11 // pred_check
        %p162 = pneg %p113
      $region22: #{transition_forward_nhwc.1} parent=11 // pred_check_branch
        %164 = sbr.rel (%p162) target = $region24
      $region23: #{transition_forward_nhwc.1} parent=11 // pred_region
        _
      $region24: #{transition_forward_nhwc.1} parent=11 // pred_fallthru
        _
    $region12: #{transition_forward_nhwc.1} parent=5 // pred_fallthru
      _
    %p165 = scmp.lt.s32.totalorder %s10, 2
    // Predicated region
    $region25: #{transition_forward_nhwc.1} parent=5 // pred_check
      %p166 = pneg %p165
    $region26: #{transition_forward_nhwc.1} parent=5 // pred_check_branch
      %168 = sbr.rel (%p166) target = $region28
    $region27: #{transition_forward_nhwc.1} parent=5 // pred_region
      // Predicated region
      $region29: #{transition_forward_nhwc.1} parent=27 // pred_check
        %p169 = pneg %p44
      $region30: #{transition_forward_nhwc.1} parent=27 // pred_check_branch
        %171 = sbr.rel (%p169) target = $region32
      $region31: #{transition_forward_nhwc.1} parent=27 // pred_region
        %s172 = smul.u32 16, %s18
        %p173 = scmp.lt.s32.totalorder %s17, 1
        %s174 = scalar_select %p173, %s17, 1
        %p175 = scmp.lt.s32.totalorder %s172, 15
        %s176 = scalar_select %p175, %s172, 15
        %s177 = smul.addr %s176, 2
        %s178 = smul.addr %s174, 32
        %s179 = sadd.s32 %s177, %s178
        %s180 = smul.addr %s179, 8
        %s181 = scalar_lea.vmem %s0, %s180
        %s182 = smul.u32 16, %s18
      $region32: #{transition_forward_nhwc.1} parent=27 // pred_fallthru
        _
    $region28: #{transition_forward_nhwc.1} parent=5 // pred_fallthru
      _
    %p183 = scmp.le.s32.totalorder 1, %s10
    %p184 = scmp.lt.s32.totalorder %s10, 3
    %p185 = pnand %p183, %p184
    %p186 = pneg %p185
    // Predicated region
    $region33: #{transition_forward_nhwc.1} parent=5 // pred_check
      _
    $region34: #{transition_forward_nhwc.1} parent=5 // pred_check_branch
      %188 = sbr.rel (%p185) target = $region36
    $region35: #{transition_forward_nhwc.1} parent=5 // pred_region
      %s189 = ssub.s32 %s10, 1
      %s190 = smul.u32 16, %s20
      %p191 = scmp.lt.s32.totalorder %s19, 1
      %s192 = scalar_select %p191, %s19, 1
      %p193 = scmp.lt.s32.totalorder %s190, 15
      %s194 = scalar_select %p193, %s190, 15
      %s195 = smul.addr %s194, 2
      %s196 = smul.addr %s192, 32
      %s197 = sadd.s32 %s195, %s196
      %s198 = smul.addr %s197, 8
      %s199 = scalar_lea.vmem %s0, %s198
      %p200 = pneg %p50
      %p201 = pneg %p47
      %p202 = pneg %p71
      %p203 = pneg %p68
      %p204 = pneg %p92
      %p205 = pneg %p89
      %p206 = pneg %p113
      %p207 = pneg %p110
      %p208 = pneg %p141
      %p209 = pneg %p138
      %s210 = smul.u32 8, %s20
      %p211 = scmp.lt.s32.totalorder %s19, 1
      %s212 = scalar_select %p211, %s19, 1
      %p213 = scmp.lt.s32.totalorder %s210, 7
      %s214 = scalar_select %p213, %s210, 7
      %s215 = smul.addr %s212, 8
      %s216 = sadd.s32 %s214, %s215
      %s217 = smul.addr %s216, 8
      %s218 = scalar_lea.vmem %s4, %s217
      %s219 = smul.u32 16, %s20
      %p220 = scmp.lt.s32.totalorder %s19, 1
      %s221 = scalar_select %p220, %s19, 1
      %p222 = scmp.lt.s32.totalorder %s219, 15
      %s223 = scalar_select %p222, %s219, 15
      %s224 = smul.addr %s223, 2
      %s225 = smul.addr %s221, 32
      %s226 = sadd.s32 %s224, %s225
      %s227 = smul.addr %s226, 8
      %s228 = scalar_lea.vmem %s0, %s227
      %s229 = smul.u32 16, %s20
      %s230 = smul.u32 8, %s20
      %p231 = scmp.lt.s32.totalorder %s19, 1
      %s232 = scalar_select %p231, %s19, 1
      %p233 = scmp.lt.s32.totalorder %s230, 7
      %s234 = scalar_select %p233, %s230, 7
      %s235 = smul.addr %s232, 8
      %s236 = sadd.s32 %s234, %s235
      %s237 = smul.addr %s236, 8
      %s238 = scalar_lea.vmem %s4, %s237
      %s239 = smul.u32 8, %s20
      %v241 = vld [vmem:[%s228] sm:$0xff]
      %v242 = vld [vmem:[%s228 + $0x8] sm:$0xff]
      %v243 = vld [vmem:[%s228 + $0x10] sm:$0xff]
      %v244 = vld [vmem:[%s228 + $0x18] sm:$0xff]
      %v245 = vld [vmem:[%s228 + $0x20] sm:$0xff]
      %v246 = vld [vmem:[%s228 + $0x28] sm:$0xff]
      %v247 = vld [vmem:[%s228 + $0x30] sm:$0xff]
      %v248 = vld [vmem:[%s228 + $0x38] sm:$0xff]
      %v249 = vld [vmem:[%s228 + $0x40] sm:$0xff]
      %v250 = vld [vmem:[%s228 + $0x48] sm:$0xff]
      %v251 = vld [vmem:[%s228 + $0x50] sm:$0xff]
      %v252 = vld [vmem:[%s228 + $0x58] sm:$0xff]
      %v253 = vld [vmem:[%s228 + $0x60] sm:$0xff]
      %v254 = vld [vmem:[%s228 + $0x68] sm:$0xff]
      %v255 = vld [vmem:[%s228 + $0x70] sm:$0xff]
      %v256 = vld [vmem:[%s228 + $0x78] sm:$0xff]
      %v257 = vld [vmem:[%s228 + $0x80] sm:$0xff]
      %v258 = vld [vmem:[%s228 + $0x88] sm:$0xff]
      %v259 = vld [vmem:[%s228 + $0x90] sm:$0xff]
      %v260 = vld [vmem:[%s228 + $0x98] sm:$0xff]
      %v261 = vld [vmem:[%s228 + $0xa0] sm:$0xff]
      %v262 = vld [vmem:[%s228 + $0xa8] sm:$0xff]
      %v263 = vld [vmem:[%s228 + $0xb0] sm:$0xff]
      %v264 = vld [vmem:[%s228 + $0xb8] sm:$0xff]
      %v265 = vld [vmem:[%s228 + $0xc0] sm:$0xff]
      %v266 = vld [vmem:[%s228 + $0xc8] sm:$0xff]
      %v267 = vld [vmem:[%s228 + $0xd0] sm:$0xff]
      %v268 = vld [vmem:[%s228 + $0xd8] sm:$0xff]
      %v269 = vld [vmem:[%s228 + $0xe0] sm:$0xff]
      %v270 = vld [vmem:[%s228 + $0xe8] sm:$0xff]
      %v271 = vld [vmem:[%s228 + $0xf0] sm:$0xff]
      %v272 = vld [vmem:[%s228 + $0xf8] sm:$0xff]
      %v273 = vld [vmem:[%s1] sm:$0x1]
      %v275 = vlaneseq
      %v276 = vshrl.u32 %v275, 7
      %v277 = vsub.s32 0, %v276
      %v278 = vrot.slane %v273, %v277
      %v280 = vmul.f32 %v241, %v278
      %v281 = vmul.f32 %v242, %v278
      %v282 = vmul.f32 %v243, %v278
      %v283 = vmul.f32 %v244, %v278
      %v284 = vmul.f32 %v245, %v278
      %v285 = vmul.f32 %v246, %v278
      %v286 = vmul.f32 %v247, %v278
      %v287 = vmul.f32 %v248, %v278
      %v288 = vmul.f32 %v249, %v278
      %v289 = vmul.f32 %v250, %v278
      %v290 = vmul.f32 %v251, %v278
      %v291 = vmul.f32 %v252, %v278
      %v292 = vmul.f32 %v253, %v278
      %v293 = vmul.f32 %v254, %v278
      %v294 = vmul.f32 %v255, %v278
      %v295 = vmul.f32 %v256, %v278
      %v296 = vmul.f32 %v257, %v278
      %v297 = vmul.f32 %v258, %v278
      %v298 = vmul.f32 %v259, %v278
      %v299 = vmul.f32 %v260, %v278
      %v300 = vmul.f32 %v261, %v278
      %v301 = vmul.f32 %v262, %v278
      %v302 = vmul.f32 %v263, %v278
      %v303 = vmul.f32 %v264, %v278
      %v304 = vmul.f32 %v265, %v278
      %v305 = vmul.f32 %v266, %v278
      %v306 = vmul.f32 %v267, %v278
      %v307 = vmul.f32 %v268, %v278
      %v308 = vmul.f32 %v269, %v278
      %v309 = vmul.f32 %v270, %v278
      %v310 = vmul.f32 %v271, %v278
      %v311 = vmul.f32 %v272, %v278
      %v312 = vld [vmem:[%s2] sm:$0x1]
      %v314 = vlaneseq
      %v315 = vshrl.u32 %v314, 7
      %v316 = vsub.s32 0, %v315
      %v317 = vrot.slane %v312, %v316
      %v319 = vadd.f32 %v280, %v317
      %v320 = vadd.f32 %v281, %v317
      %v321 = vadd.f32 %v282, %v317
      %v322 = vadd.f32 %v283, %v317
      %v323 = vadd.f32 %v284, %v317
      %v324 = vadd.f32 %v285, %v317
      %v325 = vadd.f32 %v286, %v317
      %v326 = vadd.f32 %v287, %v317
      %v327 = vadd.f32 %v288, %v317
      %v328 = vadd.f32 %v289, %v317
      %v329 = vadd.f32 %v290, %v317
      %v330 = vadd.f32 %v291, %v317
      %v331 = vadd.f32 %v292, %v317
      %v332 = vadd.f32 %v293, %v317
      %v333 = vadd.f32 %v294, %v317
      %v334 = vadd.f32 %v295, %v317
      %v335 = vadd.f32 %v296, %v317
      %v336 = vadd.f32 %v297, %v317
      %v337 = vadd.f32 %v298, %v317
      %v338 = vadd.f32 %v299, %v317
      %v339 = vadd.f32 %v300, %v317
      %v340 = vadd.f32 %v301, %v317
      %v341 = vadd.f32 %v302, %v317
      %v342 = vadd.f32 %v303, %v317
      %v343 = vadd.f32 %v304, %v317
      %v344 = vadd.f32 %v305, %v317
      %v345 = vadd.f32 %v306, %v317
      %v346 = vadd.f32 %v307, %v317
      %v347 = vadd.f32 %v308, %v317
      %v348 = vadd.f32 %v309, %v317
      %v349 = vadd.f32 %v310, %v317
      %v350 = vadd.f32 %v311, %v317
      %v351 = vmax.f32 %v319, 0.0
      %v352 = vmax.f32 %v320, 0.0
      %v353 = vmax.f32 %v321, 0.0
      %v354 = vmax.f32 %v322, 0.0
      %v355 = vmax.f32 %v323, 0.0
      %v356 = vmax.f32 %v324, 0.0
      %v357 = vmax.f32 %v325, 0.0
      %v358 = vmax.f32 %v326, 0.0
      %v359 = vmax.f32 %v327, 0.0
      %v360 = vmax.f32 %v328, 0.0
      %v361 = vmax.f32 %v329, 0.0
      %v362 = vmax.f32 %v330, 0.0
      %v363 = vmax.f32 %v331, 0.0
      %v364 = vmax.f32 %v332, 0.0
      %v365 = vmax.f32 %v333, 0.0
      %v366 = vmax.f32 %v334, 0.0
      %v367 = vmax.f32 %v335, 0.0
      %v368 = vmax.f32 %v336, 0.0
      %v369 = vmax.f32 %v337, 0.0
      %v370 = vmax.f32 %v338, 0.0
      %v371 = vmax.f32 %v339, 0.0
      %v372 = vmax.f32 %v340, 0.0
      %v373 = vmax.f32 %v341, 0.0
      %v374 = vmax.f32 %v342, 0.0
      %v375 = vmax.f32 %v343, 0.0
      %v376 = vmax.f32 %v344, 0.0
      %v377 = vmax.f32 %v345, 0.0
      %v378 = vmax.f32 %v346, 0.0
      %v379 = vmax.f32 %v347, 0.0
      %v380 = vmax.f32 %v348, 0.0
      %v381 = vmax.f32 %v349, 0.0
      %v382 = vmax.f32 %v350, 0.0
      %v383 = vadd.f32 %v351, %v353
      %v384 = vadd.f32 %v352, %v354
      %v385 = vadd.f32 %v355, %v357
      %v386 = vadd.f32 %v356, %v358
      %v387 = vadd.f32 %v359, %v361
      %v388 = vadd.f32 %v360, %v362
      %v389 = vadd.f32 %v363, %v365
      %v390 = vadd.f32 %v364, %v366
      %v391 = vadd.f32 %v367, %v369
      %v392 = vadd.f32 %v368, %v370
      %v393 = vadd.f32 %v371, %v373
      %v394 = vadd.f32 %v372, %v374
      %v395 = vadd.f32 %v375, %v377
      %v396 = vadd.f32 %v376, %v378
      %v397 = vadd.f32 %v379, %v381
      %v398 = vadd.f32 %v380, %v382
      %vm399 = vcmask 64512
      %400 = vst.msk [vmem:[#allocation2] sm:$0xff] %vm399, %v383
      %401 = vst.msk [vmem:[#allocation2 + $0x8] sm:$0xff] %vm399, %v384
      %402 = vst.msk [vmem:[#allocation2 + $0x10] sm:$0xff] %vm399, %v385
      %403 = vst.msk [vmem:[#allocation2 + $0x18] sm:$0xff] %vm399, %v386
      %404 = vst.msk [vmem:[#allocation2 + $0x20] sm:$0xff] %vm399, %v387
      %405 = vst.msk [vmem:[#allocation2 + $0x28] sm:$0xff] %vm399, %v388
      %406 = vst.msk [vmem:[#allocation2 + $0x30] sm:$0xff] %vm399, %v389
      %407 = vst.msk [vmem:[#allocation2 + $0x38] sm:$0xff] %vm399, %v390
      %408 = vst.msk [vmem:[#allocation2 + $0x40] sm:$0xff] %vm399, %v391
      %409 = vst.msk [vmem:[#allocation2 + $0x48] sm:$0xff] %vm399, %v392
      %410 = vst.msk [vmem:[#allocation2 + $0x50] sm:$0xff] %vm399, %v393
      %411 = vst.msk [vmem:[#allocation2 + $0x58] sm:$0xff] %vm399, %v394
      %412 = vst.msk [vmem:[#allocation2 + $0x60] sm:$0xff] %vm399, %v395
      %413 = vst.msk [vmem:[#allocation2 + $0x68] sm:$0xff] %vm399, %v396
      %414 = vst.msk [vmem:[#allocation2 + $0x70] sm:$0xff] %vm399, %v397
      %415 = vst.msk [vmem:[#allocation2 + $0x78] sm:$0xff] %vm399, %v398
      %v416 = vld [vmem:[#allocation2] ss:$2 sm:$0xff]
      %s417 = scalar_lea.vmem [#allocation2], 16
      %v418 = vld [vmem:[%s417] ss:$2 sm:$0xff]
      %s419 = scalar_lea.vmem [#allocation2], 32
      %v420 = vld [vmem:[%s419] ss:$2 sm:$0xff]
      %s421 = scalar_lea.vmem [#allocation2], 48
      %v422 = vld [vmem:[%s421] ss:$2 sm:$0xff]
      %s423 = scalar_lea.vmem [#allocation2], 64
      %v424 = vld [vmem:[%s423] ss:$2 sm:$0xff]
      %s425 = scalar_lea.vmem [#allocation2], 80
      %v426 = vld [vmem:[%s425] ss:$2 sm:$0xff]
      %s427 = scalar_lea.vmem [#allocation2], 96
      %v428 = vld [vmem:[%s427] ss:$2 sm:$0xff]
      %s429 = scalar_lea.vmem [#allocation2], 112
      %v430 = vld [vmem:[%s429] ss:$2 sm:$0xff]
      %s431 = scalar_lea.vmem [#allocation2], 1
      %v432 = vld [vmem:[%s431] ss:$2 sm:$0xff]
      %s433 = scalar_lea.vmem [#allocation2], 17
      %v434 = vld [vmem:[%s433] ss:$2 sm:$0xff]
      %s435 = scalar_lea.vmem [#allocation2], 33
      %v436 = vld [vmem:[%s435] ss:$2 sm:$0xff]
      %s437 = scalar_lea.vmem [#allocation2], 49
      %v438 = vld [vmem:[%s437] ss:$2 sm:$0xff]
      %s439 = scalar_lea.vmem [#allocation2], 65
      %v440 = vld [vmem:[%s439] ss:$2 sm:$0xff]
      %s441 = scalar_lea.vmem [#allocation2], 81
      %v442 = vld [vmem:[%s441] ss:$2 sm:$0xff]
      %s443 = scalar_lea.vmem [#allocation2], 97
      %v444 = vld [vmem:[%s443] ss:$2 sm:$0xff]
      %s445 = scalar_lea.vmem [#allocation2], 113
      %v446 = vld [vmem:[%s445] ss:$2 sm:$0xff]
      %v447 = vadd.f32 %v416, %v432
      %v448 = vadd.f32 %v418, %v434
      %v449 = vadd.f32 %v420, %v436
      %v450 = vadd.f32 %v422, %v438
      %v451 = vadd.f32 %v424, %v440
      %v452 = vadd.f32 %v426, %v442
      %v453 = vadd.f32 %v428, %v444
      %v454 = vadd.f32 %v430, %v446
      %v455 = vmul.f32 %v447, 0.25
      %v456 = vmul.f32 %v448, 0.25
      %v457 = vmul.f32 %v449, 0.25
      %v458 = vmul.f32 %v450, 0.25
      %v459 = vmul.f32 %v451, 0.25
      %v460 = vmul.f32 %v452, 0.25
      %v461 = vmul.f32 %v453, 0.25
      %v462 = vmul.f32 %v454, 0.25
      %v463 = vpack.c.bf16 %v456, %v455
      %v464 = vpack.c.bf16 %v458, %v457
      %v465 = vpack.c.bf16 %v460, %v459
      %v466 = vpack.c.bf16 %v462, %v461
      %v467 = vld [vmem:[%s3] sm:$0xf]
      %v469 = vsel %vm399, %v463, 0
      %v472 = vsel %vm399, %v464, 0
      %v475 = vsel %vm399, %v465, 0
      %v478 = vsel %vm399, %v466, 0
      %vm480 = vcmask 1043456
      %v482 = vsel %vm480, %v467, 0
      %484 = vmatprep.subr.bf16.mxu0 0
      %485 = vmatpush1.bf16.msra.mxu0 %v482
      %486 = vmatprep.subr.bf16.mxu0 0
      %487 = vmatpush1.bf16.msra.mxu0 0
      %488 = vmatprep.subr.bf16.mxu0 0
      %489 = vmatpush1.bf16.msra.mxu0 0
      %490 = vmatprep.subr.bf16.mxu0 0
      %491 = vmatpush1.bf16.msra.mxu0 0
      %492 = vmatprep.subr.bf16.mxu0 0
      %493 = vmatpush1.bf16.msra.mxu0 0
      %494 = vmatprep.subr.bf16.mxu0 0
      %495 = vmatpush1.bf16.msra.mxu0 0
      %496 = vmatprep.subr.bf16.mxu0 0
      %497 = vmatpush1.bf16.msra.mxu0 0
      %498 = vmatprep.subr.bf16.mxu0 0
      %499 = vmatpush1.bf16.msra.mxu0 0
      %500 = vmatprep.subr.bf16.mxu0 0
      %501 = vmatpush1.bf16.msra.mxu0 0
      %502 = vmatprep.subr.bf16.mxu0 0
      %503 = vmatpush1.bf16.msra.mxu0 0
      %504 = vmatprep.subr.bf16.mxu0 0
      %505 = vmatpush1.bf16.msra.mxu0 0
      %506 = vmatprep.subr.bf16.mxu0 0
      %507 = vmatpush1.bf16.msra.mxu0 0
      %508 = vmatprep.subr.bf16.mxu0 0
      %509 = vmatpush1.bf16.msra.mxu0 0
      %510 = vmatprep.subr.bf16.mxu0 0
      %511 = vmatpush1.bf16.msra.mxu0 0
      %512 = vmatprep.subr.bf16.mxu0 0
      %513 = vmatpush1.bf16.msra.mxu0 0
      %514 = vmatprep.subr.bf16.mxu0 0
      %515 = vmatpush1.bf16.msra.mxu0 0
      %516 = vmatprep.mubr.bf16.mxu0 0
      %517 = vmatmul.mubr.bf16.gmra.mrb[0].mxu0 %v469
      %v518 = vpop.f32.mrb[0].mxu0
      %v519 = vadd.f32 0.0, %v518
      %v520 = vpop.f32.mrb[0].mxu0
      %v521 = vpop.f32.mrb[0].mxu0
      %v522 = vadd.f32 0.0, %v521
      %v523 = vpop.f32.mrb[0].mxu0
      %524 = vmatprep.mubr.bf16.mxu0 0
      %525 = vmatmul.mubr.bf16.gmra.mrb[0].mxu0 %v472
      %v526 = vpop.f32.mrb[0].mxu0
      %v527 = vadd.f32 0.0, %v526
      %v528 = vpop.f32.mrb[0].mxu0
      %v529 = vpop.f32.mrb[0].mxu0
      %v530 = vadd.f32 0.0, %v529
      %v531 = vpop.f32.mrb[0].mxu0
      %532 = vmatprep.mubr.bf16.mxu0 0
      %533 = vmatmul.mubr.bf16.gmra.mrb[0].mxu0 %v475
      %v534 = vpop.f32.mrb[0].mxu0
      %v535 = vadd.f32 0.0, %v534
      %v536 = vpop.f32.mrb[0].mxu0
      %v537 = vpop.f32.mrb[0].mxu0
      %v538 = vadd.f32 0.0, %v537
      %v539 = vpop.f32.mrb[0].mxu0
      %540 = vmatprep.mubr.bf16.mxu0 0
      %541 = vmatmul.mubr.bf16.gmra.mrb[0].mxu0 %v478
      %v542 = vpop.f32.mrb[0].mxu0
      %v543 = vadd.f32 0.0, %v542
      %v544 = vpop.f32.mrb[0].mxu0
      %v545 = vpop.f32.mrb[0].mxu0
      %v546 = vadd.f32 0.0, %v545
      %v547 = vpop.f32.mrb[0].mxu0
      %548 = vdwg.mxu0
      %vm549 = vcmask 31744
      %550 = vst.msk [vmem:[%s238] sm:$0xff] %vm549, %v519
      %551 = vst.msk [vmem:[%s238 + $0x8] sm:$0xff] %vm549, %v522
      %552 = vst.msk [vmem:[%s238 + $0x10] sm:$0xff] %vm549, %v527
      %553 = vst.msk [vmem:[%s238 + $0x18] sm:$0xff] %vm549, %v530
      %554 = vst.msk [vmem:[%s238 + $0x20] sm:$0xff] %vm549, %v535
      %555 = vst.msk [vmem:[%s238 + $0x28] sm:$0xff] %vm549, %v538
      %556 = vst.msk [vmem:[%s238 + $0x30] sm:$0xff] %vm549, %v543
      %557 = vst.msk [vmem:[%s238 + $0x38] sm:$0xff] %vm549, %v546
      %s558 = smul.u32 8, %s20
      %p559 = scmp.lt.s32.totalorder %s19, 1
      %s560 = scalar_select %p559, %s19, 1
      %p561 = scmp.lt.s32.totalorder %s558, 7
      %s562 = scalar_select %p561, %s558, 7
      %s563 = smul.addr %s560, 8
      %s564 = sadd.s32 %s562, %s563
      %s565 = smul.addr %s564, 8
      %s566 = scalar_lea.vmem %s4, %s565
      // Predicated region
      $region37: #{transition_forward_nhwc.1} parent=35 // pred_check
        %p567 = pneg %p138
      $region38: #{transition_forward_nhwc.1} parent=35 // pred_check_branch
        %569 = sbr.rel (%p567) target = $region40
      $region39: #{transition_forward_nhwc.1} parent=35 // pred_region
        %s570 = smul.u32 8, %s20
      $region40: #{transition_forward_nhwc.1} parent=35 // pred_fallthru
        _
    $region36: #{transition_forward_nhwc.1} parent=5 // pred_fallthru
      _
    %p571 = scmp.le.s32.totalorder 2, %s10
    // Predicated region
    $region41: #{transition_forward_nhwc.1} parent=5 // pred_check
      %p572 = pneg %p571
    $region42: #{transition_forward_nhwc.1} parent=5 // pred_check_branch
      %574 = sbr.rel (%p572) target = $region44
    $region43: #{transition_forward_nhwc.1} parent=5 // pred_region
      %s575 = ssub.s32 %s10, 2
      // Predicated region
      $region45: #{transition_forward_nhwc.1} parent=43 // pred_check
        %p576 = pneg %p144
      $region46: #{transition_forward_nhwc.1} parent=43 // pred_check_branch
        %578 = sbr.rel (%p576) target = $region48
      $region47: #{transition_forward_nhwc.1} parent=43 // pred_region
        %s579 = smul.u32 8, %s22
        %p580 = scmp.lt.s32.totalorder %s21, 1
        %s581 = scalar_select %p580, %s21, 1
        %p582 = scmp.lt.s32.totalorder %s579, 7
        %s583 = scalar_select %p582, %s579, 7
        %s584 = smul.addr %s581, 8
        %s585 = sadd.s32 %s583, %s584
        %s586 = smul.addr %s585, 8
        %s587 = scalar_lea.vmem %s4, %s586
      $region48: #{transition_forward_nhwc.1} parent=43 // pred_fallthru
        _
    $region44: #{transition_forward_nhwc.1} parent=5 // pred_fallthru
      _
  $region6: #{transition_forward_nhwc.1} parent=0 // loop_footer
    %s14 = sadd.s32 1, %s10
  $region7: #{transition_forward_nhwc.1} parent=0 // loop_footer_branch
    %9 = sbr.rel target = $region3
  $region8: #{transition_forward_nhwc.1} parent=0 // loop_exit
    _

</llo_original>
